<compile_context>
chip_gen: v6e
topology: v6e:2x2x1
jax: 0.10.0
libtpu: 0.0.40
codegen_flags: <defaults>
</compile_context>

<pallas_src>
import jax
import jax.numpy as jnp
from jax.experimental import pallas as pl
from jax.experimental.pallas import tpu as pltpu


def _round_up(x, m):
    return ((x + m - 1) // m) * m


def _cdiv(a, b):
    return (a + b - 1) // b


def _vmem_capacity_bytes():
    """Physical per-core VMEM; conservative fallback if the query fails."""
    try:
        info = pltpu.get_tpu_info()
        cap = int(getattr(info, "vmem_capacity_bytes", 0))
        if cap > 0:
            return cap
    except Exception:
        pass
    return 64 * 1024 * 1024  # v7x-sized fallback; safe on every generation


def _sublane_align(dtype):
    return max(8, 32 // jnp.dtype(dtype).itemsize)


def prepare_params(params, *, compute_dtype=jnp.bfloat16, fold=True):
    """One-time weight prep, hoisted out of the per-call forward.

    params: [(w1,b1),(w2,b2),(w3,b3),(w4,b4)], w as (in, out), b as (1, out),
    all float32.  Adjacent (purely linear) layers are folded in f32 when that
    shrinks the weights; weights are then cast to compute_dtype (MXU operand
    dtype) while biases stay float32 (in-kernel accumulation is f32).
    """
    def maybe_fold(pair):
        (wa, ba), (wb, bb) = pair
        fused = wa.shape[0] * wb.shape[1]
        if fold and fused <= (wa.size + wb.size):
            return [(wa @ wb, ba @ wb + bb)]      # f32 fold; exact same math
        return [(wa, ba), (wb, bb)]

    assert len(params) == 4
    layers = maybe_fold(params[:2]) + maybe_fold(params[2:])
    return [(w.astype(compute_dtype), b.astype(jnp.float32)) for w, b in layers]


def _make_kernel(n_layers):
    def kernel(x_ref, *refs):
        o_ref = refs[-1]
        h = x_ref[...]
        for li in range(n_layers):
            w = refs[2 * li][...]
            b = refs[2 * li + 1][...]
            h = jnp.dot(h.astype(w.dtype), w,
                        preferred_element_type=jnp.float32) + b
        o_ref[...] = h.astype(o_ref.dtype)
    return kernel


def mlp_ae_forward(x, layers, *, block_b=1024, out_dtype=None):
    """x: (B, T, D).  layers: output of prepare_params.  Returns (B, T, D)."""
    B, T, D = x.shape
    flat = T * D
    assert layers[0][0].shape[0] == flat and layers[-1][0].shape[1] == flat
    out_dtype = x.dtype if out_dtype is None else out_dtype

    x2d = x.reshape(B, flat)                      # Flatten(): free (contiguous)
    widths = [w.shape[1] for w, _ in layers]

    # ---- generation-aware VMEM budget / explicit scoped-VMEM limit ----------
    cap = _vmem_capacity_bytes()                  # 128 MiB v5e/v6e, 64 MiB v7x
    budget = min(int(cap * 0.65), 80 * 1024 * 1024)

    in_itemsize = jnp.dtype(x.dtype).itemsize
    out_itemsize = jnp.dtype(out_dtype).itemsize
    # Weights/biases are resident; count x2 for the pipeline's double buffer.
    # TODO(synk): pipeline_mode=pl.Buffered(1) on the constant weight specs
    # would reclaim the second buffer once that path is battle-tested.
    w_bytes = 2 * sum(w.size * w.dtype.itemsize + b.size * 4 for w, b in layers)
    per_row = (2 * (in_itemsize + out_itemsize) * flat   # double-buffered I/O
               + 4 * sum(widths))                        # f32 intermediates

    sub_align = max(_sublane_align(x.dtype), _sublane_align(out_dtype))
    tb = max(sub_align, min(_round_up(block_b, sub_align),
                            _round_up(B, sub_align)))
    while tb > sub_align and w_bytes + tb * per_row > budget:
        tb = max(sub_align, _round_up(tb // 2, sub_align))
    # TODO(synk): if weights alone blow the budget (tb collapses to the
    # minimum), switch to a K-tiled reduction grid instead of shrinking TB.

    # Split into >=2 tiles when possible so v7x's two TensorCores both work.
    if _cdiv(B, tb) == 1 and B > sub_align:
        tb = max(sub_align, _round_up(_cdiv(B, 2), sub_align))
    nb = _cdiv(B, tb)

    vmem_limit = int(min(max(budget, w_bytes + sub_align * per_row)
                         + 16 * 1024 * 1024, cap * 0.92))

    flops = 2 * B * sum(w.shape[0] * w.shape[1] for w, _ in layers)
    bytes_accessed = (B * flat * (in_itemsize + out_itemsize)
                      + sum(w.size * w.dtype.itemsize + b.size * 4
                            for w, b in layers))

    def full2d(a):
        return pl.BlockSpec(a.shape, lambda i: (0, 0))

    in_specs = [pl.BlockSpec((tb, flat), lambda i: (i, 0))]
    flat_args = [x2d]
    for w, b in layers:
        in_specs += [full2d(w), full2d(b)]
        flat_args += [w, b]

    out2d = pl.pallas_call(
        _make_kernel(len(layers)),
        out_shape=jax.ShapeDtypeStruct((B, flat), out_dtype),
        grid=(nb,),
        in_specs=in_specs,
        out_specs=pl.BlockSpec((tb, flat), lambda i: (i, 0)),
        compiler_params=pltpu.CompilerParams(
            dimension_semantics=("parallel",),
            vmem_limit_bytes=vmem_limit),
        cost_estimate=pl.CostEstimate(flops=flops, transcendentals=0,
                                      bytes_accessed=bytes_accessed),
    )(*flat_args)

    return out2d.reshape(B, T, D)                 # Reshape((T, D)): free


def init_params(key, timesteps, input_dim, units_enc, latent_dim, units_dec):
    """Deterministic init mimicking nn.Linear defaults (uniform +/-1/sqrt(fan_in)).
    Weights stored as (in, out) = transposed relative to PyTorch's (out, in)."""
    flat = timesteps * input_dim
    dims = [(flat, units_enc), (units_enc, latent_dim),
            (latent_dim, units_dec), (units_dec, flat)]
    params = []
    keys = jax.random.split(key, 2 * len(dims))
    for li, (fan_in, fan_out) in enumerate(dims):
        bound = float(fan_in) ** -0.5
        w = jax.random.uniform(keys[2 * li], (fan_in, fan_out),
                               minval=-bound, maxval=bound, dtype=jnp.float32)
        b = jax.random.uniform(keys[2 * li + 1], (1, fan_out),
                               minval=-bound, maxval=bound, dtype=jnp.float32)
        params.append((w, b))
    return params


def reference_forward(x, params):
    B, T, D = x.shape
    h = x.reshape(B, T * D)
    for w, b in params:
        h = h @ w + b
    return h.reshape(B, T, D)


if __name__ == "__main__":
    # Small shapes consistent with the module.
    batch, timesteps, input_dim = 2, 8, 4
    units_enc, latent_dim, units_dec = 32, 16, 32

    key = jax.random.PRNGKey(0)
    k_x, k_p, k_x2 = jax.random.split(key, 3)
    x = jax.random.normal(k_x, (batch, timesteps, input_dim), dtype=jnp.float32)
    params = init_params(k_p, timesteps, input_dim,
                         units_enc, latent_dim, units_dec)
    ref = reference_forward(x, params)

    # 1) f32 weights, folded layers (2 fused dots), tiny batch.
    layers_f32 = prepare_params(params, compute_dtype=jnp.float32, fold=True)
    out = jax.block_until_ready(mlp_ae_forward(x, layers_f32))
    assert out.shape == (batch, timesteps, input_dim)
    assert jnp.allclose(out, ref, atol=1e-4, rtol=1e-4)

    # 2) f32 weights, unfolded: exercises the full 4-dot chain.
    layers_4 = prepare_params(params, compute_dtype=jnp.float32, fold=False)
    out4 = jax.block_until_ready(mlp_ae_forward(x, layers_4))
    assert jnp.allclose(out4, ref, atol=1e-4, rtol=1e-4)

    # 3) larger non-multiple-of-8 batch: multiple grid tiles + ragged tail.
    xb = jax.random.normal(k_x2, (300, timesteps, input_dim), dtype=jnp.float32)
    refb = reference_forward(xb, params)
    outb = jax.block_until_ready(mlp_ae_forward(xb, layers_f32, block_b=128))
    assert jnp.allclose(outb, refb, atol=1e-4, rtol=1e-4)

    # 4) bf16 MXU operands + bf16 output (f32 accumulation in-kernel).
    layers_bf16 = prepare_params(params)          # compute_dtype=bf16 default
    outb_bf = jax.block_until_ready(
        mlp_ae_forward(xb, layers_bf16, out_dtype=jnp.bfloat16))
    assert jnp.allclose(outb_bf.astype(jnp.float32), refb,
                        atol=5e-2, rtol=5e-2)

    print("KERNEL_OK")
</pallas_src>

<mosaic_0001>
module attributes {stable_mosaic.version = 11 : i64} {
  func.func @kernel(%arg0: i32, %arg1: memref<8x32xf32, #tpu.memory_space<vmem>>, %arg2: memref<32x16xf32, #tpu.memory_space<vmem>>, %arg3: memref<1x16xf32, #tpu.memory_space<vmem>>, %arg4: memref<16x32xf32, #tpu.memory_space<vmem>>, %arg5: memref<1x32xf32, #tpu.memory_space<vmem>>, %arg6: memref<8x32xf32, #tpu.memory_space<vmem>>) attributes {dimension_semantics = [#tpu.dimension_semantics<parallel>], iteration_bounds = array<i64: 1>, scalar_prefetch = 0 : i64, scratch_operands = 0 : i64, tpu.core_type = #tpu.core_type<tc>, window_params = [{transform_indices = @transform_0, window_bounds = array<i64: 8, 32>}, {pipeline_mode = #tpu.pipeline_mode<synchronous>, transform_indices = @transform_1, window_bounds = array<i64: 32, 16>}, {pipeline_mode = #tpu.pipeline_mode<synchronous>, transform_indices = @transform_2, window_bounds = array<i64: 1, 16>}, {pipeline_mode = #tpu.pipeline_mode<synchronous>, transform_indices = @transform_3, window_bounds = array<i64: 16, 32>}, {pipeline_mode = #tpu.pipeline_mode<synchronous>, transform_indices = @transform_4, window_bounds = array<i64: 1, 32>}, {transform_indices = @transform_5, window_bounds = array<i64: 8, 32>}]} {
    %c0 = arith.constant 0 : index
    %c0_0 = arith.constant 0 : index
    %0 = vector.load %arg1[%c0, %c0_0] : memref<8x32xf32, #tpu.memory_space<vmem>>, vector<8x32xf32>
    %c0_1 = arith.constant 0 : index
    %c0_2 = arith.constant 0 : index
    %1 = vector.load %arg2[%c0_1, %c0_2] : memref<32x16xf32, #tpu.memory_space<vmem>>, vector<32x16xf32>
    %c0_3 = arith.constant 0 : index
    %c0_4 = arith.constant 0 : index
    %2 = vector.load %arg3[%c0_3, %c0_4] : memref<1x16xf32, #tpu.memory_space<vmem>>, vector<1x16xf32>
    %cst = arith.constant dense<0.000000e+00> : vector<8x16xf32>
    %3 = tpu.matmul %0, %1, %cst {dimension_numbers = #tpu.dot_dimension_numbers<[1], [0], [0], [1], [0, 0, 1, 1], [], []>} : vector<8x32xf32>, vector<32x16xf32>, vector<8x16xf32> -> vector<8x16xf32>
    %4 = vector.broadcast %2 : vector<1x16xf32> to vector<8x16xf32>
    %5 = arith.addf %3, %4 : vector<8x16xf32>
    %c0_5 = arith.constant 0 : index
    %c0_6 = arith.constant 0 : index
    %6 = vector.load %arg4[%c0_5, %c0_6] : memref<16x32xf32, #tpu.memory_space<vmem>>, vector<16x32xf32>
    %c0_7 = arith.constant 0 : index
    %c0_8 = arith.constant 0 : index
    %7 = vector.load %arg5[%c0_7, %c0_8] : memref<1x32xf32, #tpu.memory_space<vmem>>, vector<1x32xf32>
    %cst_9 = arith.constant dense<0.000000e+00> : vector<8x32xf32>
    %8 = tpu.matmul %5, %6, %cst_9 {dimension_numbers = #tpu.dot_dimension_numbers<[1], [0], [0], [1], [0, 0, 1, 1], [], []>} : vector<8x16xf32>, vector<16x32xf32>, vector<8x32xf32> -> vector<8x32xf32>
    %9 = vector.broadcast %7 : vector<1x32xf32> to vector<8x32xf32>
    %10 = arith.addf %8, %9 : vector<8x32xf32>
    %c0_10 = arith.constant 0 : index
    %c0_11 = arith.constant 0 : index
    %11 = vector.load %arg6[%c0_10, %c0_11] : memref<8x32xf32, #tpu.memory_space<vmem>>, vector<8x32xf32>
    tpu.vector_store %arg6[%c0_10, %c0_11], %10 {strides = array<i32>} : memref<8x32xf32, #tpu.memory_space<vmem>>, vector<8x32xf32>,
    return
  }
  func.func @transform_0(%arg0: i32) -> (i32, i32) {
    %c0_i32 = arith.constant 0 : i32
    %c0_i32_0 = arith.constant 0 : i32
    return %arg0, %c0_i32 : i32, i32
  }
  func.func @transform_1(%arg0: i32) -> (i32, i32) {
    %c0_i32 = arith.constant 0 : i32
    %c0_i32_0 = arith.constant 0 : i32
    %c0_i32_1 = arith.constant 0 : i32
    return %c0_i32, %c0_i32_0 : i32, i32
  }
  func.func @transform_2(%arg0: i32) -> (i32, i32) {
    %c0_i32 = arith.constant 0 : i32
    %c0_i32_0 = arith.constant 0 : i32
    %c0_i32_1 = arith.constant 0 : i32
    return %c0_i32, %c0_i32_0 : i32, i32
  }
  func.func @transform_3(%arg0: i32) -> (i32, i32) {
    %c0_i32 = arith.constant 0 : i32
    %c0_i32_0 = arith.constant 0 : i32
    %c0_i32_1 = arith.constant 0 : i32
    return %c0_i32, %c0_i32_0 : i32, i32
  }
  func.func @transform_4(%arg0: i32) -> (i32, i32) {
    %c0_i32 = arith.constant 0 : i32
    %c0_i32_0 = arith.constant 0 : i32
    %c0_i32_1 = arith.constant 0 : i32
    return %c0_i32, %c0_i32_0 : i32, i32
  }
  func.func @transform_5(%arg0: i32) -> (i32, i32) {
    %c0_i32 = arith.constant 0 : i32
    %c0_i32_0 = arith.constant 0 : i32
    return %arg0, %c0_i32 : i32, i32
  }
}

</mosaic_0001>

<llo_original>
// kernel: tpu_custom_call.1
$region0: #{tpu_custom_call.1}
  #allocation0 [shape = 'u32[]', space=smem, size = 0x4, offset = 0x4, fixed_abs, tag = 'smem constant byte address 0x4 - core index']
  #allocation1 [shape = 'u32[144,128]{1,0:T(1,128)}', space=vmem, size = 0x12000, scoped, tag = 'internal scratch']
  %s0 = inlined_call_operand.vmem [shape: f32[2,32], index: 0, kind: input, shape index: {}]
  %s1 = inlined_call_operand.vmem [shape: f32[32,16], index: 1, kind: input, shape index: {}]
  %s2 = inlined_call_operand.vmem [shape: f32[1,16], index: 2, kind: input, shape index: {}]
  %s3 = inlined_call_operand.vmem [shape: f32[16,32], index: 3, kind: input, shape index: {}]
  %s4 = inlined_call_operand.vmem [shape: f32[1,32], index: 4, kind: input, shape index: {}]
  %s5 = inlined_call_operand.hbm [shape: f32[2,32], index: 5, kind: output, shape index: {}]
  %s6 = sld [smem:[#allocation0]]
  $region30: #{tpu_custom_call.1} parent=0
    _
  %s8 = ssub.s32 1, %s6
  %s9 = scalar_select 0, %s8, %s6
  $region1: #{tpu_custom_call.1} parent=0
    #allocation2 [shape = 'u8[4096]{0}', space=vmem, size = 0x1000, scoped, tag = 'output window, operand 0, single buffered']
    #allocation3 [shape = 's32[1]{0}', space=sflag, size = 0x4, scoped, tag = 'scoped memory for tpu_custom_call.1']
    %10 = vsyncpa [#allocation3], 0
    // Predicated region
    $region2: #{tpu_custom_call.1} parent=1 // pred_check
      _
    $region3: #{tpu_custom_call.1} parent=1 // pred_check_branch
      %12 = sbr.rel (0) target = $region5
    $region4: #{tpu_custom_call.1} parent=1 // pred_region
      _
    $region5: #{tpu_custom_call.1} parent=1 // pred_fallthru
      _
    // Predicated region
    $region6: #{tpu_custom_call.1} parent=1 // pred_check
      _
    $region7: #{tpu_custom_call.1} parent=1 // pred_check_branch
      %14 = sbr.rel (0) target = $region9
    $region8: #{tpu_custom_call.1} parent=1 // pred_region
      _
    $region9: #{tpu_custom_call.1} parent=1 // pred_fallthru
      _
    // Predicated region
    $region10: #{tpu_custom_call.1} parent=1 // pred_check
      _
    $region11: #{tpu_custom_call.1} parent=1 // pred_check_branch
      %16 = sbr.rel (0) target = $region13
    $region12: #{tpu_custom_call.1} parent=1 // pred_region
      _
    $region13: #{tpu_custom_call.1} parent=1 // pred_fallthru
      _
    // Predicated region
    $region14: #{tpu_custom_call.1} parent=1 // pred_check
      _
    $region15: #{tpu_custom_call.1} parent=1 // pred_check_branch
      %18 = sbr.rel (0) target = $region17
    $region16: #{tpu_custom_call.1} parent=1 // pred_region
      _
    $region17: #{tpu_custom_call.1} parent=1 // pred_fallthru
      _
    // Predicated region
    $region18: #{tpu_custom_call.1} parent=1 // pred_check
      _
    $region19: #{tpu_custom_call.1} parent=1 // pred_check_branch
      %20 = sbr.rel (0) target = $region21
    $region20: #{tpu_custom_call.1} parent=1 // pred_region
      _
    $region21: #{tpu_custom_call.1} parent=1 // pred_fallthru
      _
    %v21 = vld [vmem:[%s0] sm:$0xff]
    %v22 = vld [vmem:[%s1] sm:$0xff]
    %v23 = vld [vmem:[%s1 + $0x8] sm:$0xff]
    %v24 = vld [vmem:[%s1 + $0x10] sm:$0xff]
    %v25 = vld [vmem:[%s1 + $0x18] sm:$0xff]
    %v26 = vld [vmem:[%s2] sm:$0x1]
    %v28 = vlaneseq
    %v29 = vshrl.u32 %v28, 7
    %v30 = vsub.s32 0, %v29
    %v31 = vrot.slane %v26, %v30
    %vm33 = vcmask 261120
    %v35 = vsel %vm33, %v21, 0
    %37 = vmatprep.subr.mxu0 0.0
    %38 = vmatpush1.msra.mxu0 0.0
    %39 = vmatprep.subr.mxu0 0.0
    %40 = vmatpush1.msra.mxu0 0.0
    %41 = vmatprep.subr.mxu0 0.0
    %42 = vmatpush1.msra.mxu0 0.0
    %43 = vmatprep.subr.mxu0 0.0
    %44 = vmatpush1.msra.mxu0 0.0
    %45 = vmatprep.subr.mxu0 0.0
    %46 = vmatpush1.msra.mxu0 0.0
    %47 = vmatprep.subr.mxu0 0.0
    %48 = vmatpush1.msra.mxu0 0.0
    %49 = vmatprep.subr.mxu0 0.0
    %50 = vmatpush1.msra.mxu0 0.0
    %51 = vmatprep.subr.mxu0 0.0
    %52 = vmatpush1.msra.mxu0 0.0
    %53 = vmatprep.subr.mxu0 0.0
    %54 = vmatpush1.msra.mxu0 0.0
    %55 = vmatprep.subr.mxu0 0.0
    %56 = vmatpush1.msra.mxu0 0.0
    %57 = vmatprep.subr.mxu0 0.0
    %58 = vmatpush1.msra.mxu0 0.0
    %59 = vmatprep.subr.mxu0 0.0
    %60 = vmatpush1.msra.mxu0 0.0
    %61 = vmatprep.subr.mxu0 0.0
    %62 = vmatpush1.msra.mxu0 %v25
    %63 = vmatprep.subr.mxu0 0.0
    %64 = vmatpush1.msra.mxu0 %v24
    %65 = vmatprep.subr.mxu0 0.0
    %66 = vmatpush1.msra.mxu0 %v23
    %67 = vmatprep.subr.mxu0 0.0
    %68 = vmatpush1.msra.mxu0 %v22
    %69 = vmatprep.subr.mxu0 0.0
    %70 = vmatpush2.msra.mxu0 0.0
    %71 = vmatprep.subr.mxu0 0.0
    %72 = vmatpush2.msra.mxu0 0.0
    %73 = vmatprep.subr.mxu0 0.0
    %74 = vmatpush2.msra.mxu0 0.0
    %75 = vmatprep.subr.mxu0 0.0
    %76 = vmatpush2.msra.mxu0 0.0
    %77 = vmatprep.subr.mxu0 0.0
    %78 = vmatpush2.msra.mxu0 0.0
    %79 = vmatprep.subr.mxu0 0.0
    %80 = vmatpush2.msra.mxu0 0.0
    %81 = vmatprep.subr.mxu0 0.0
    %82 = vmatpush2.msra.mxu0 0.0
    %83 = vmatprep.subr.mxu0 0.0
    %84 = vmatpush2.msra.mxu0 0.0
    %85 = vmatprep.subr.mxu0 0.0
    %86 = vmatpush2.msra.mxu0 0.0
    %87 = vmatprep.subr.mxu0 0.0
    %88 = vmatpush2.msra.mxu0 0.0
    %89 = vmatprep.subr.mxu0 0.0
    %90 = vmatpush2.msra.mxu0 0.0
    %91 = vmatprep.subr.mxu0 0.0
    %92 = vmatpush2.msra.mxu0 0.0
    %93 = vmatprep.subr.mxu0 0.0
    %94 = vmatpush2.msra.mxu0 0.0
    %95 = vmatprep.subr.mxu0 0.0
    %96 = vmatpush2.msra.mxu0 0.0
    %97 = vmatprep.subr.mxu0 0.0
    %98 = vmatpush2.msra.mxu0 0.0
    %99 = vmatprep.subr.mxu0 0.0
    %100 = vmatpush2.msra.mxu0 0.0
    %101 = vmatprep.mubr.f32.mxu0 0.0
    %102 = vmatmul.mubr.f32.gmra.mxu0 %v35
    %v103 = vpop.f32.mrf.mxu0
    %v104 = vadd.f32 %v31, %v103
    %v105 = vpop.f32.mrf.mxu0
    %106 = vdwg.mxu0
    %v107 = vld [vmem:[%s3] sm:$0xff]
    %v108 = vld [vmem:[%s3 + $0x8] sm:$0xff]
    %v109 = vld [vmem:[%s4] sm:$0x1]
    %v111 = vlaneseq
    %v112 = vshrl.u32 %v111, 7
    %v113 = vsub.s32 0, %v112
    %v114 = vrot.slane %v109, %v113
    %vm116 = vcmask 130048
    %v118 = vsel %vm116, %v104, 0
    %120 = vmatprep.subr.mxu0 0.0
    %121 = vmatpush1.msra.mxu0 0.0
    %122 = vmatprep.subr.mxu0 0.0
    %123 = vmatpush1.msra.mxu0 0.0
    %124 = vmatprep.subr.mxu0 0.0
    %125 = vmatpush1.msra.mxu0 0.0
    %126 = vmatprep.subr.mxu0 0.0
    %127 = vmatpush1.msra.mxu0 0.0
    %128 = vmatprep.subr.mxu0 0.0
    %129 = vmatpush1.msra.mxu0 0.0
    %130 = vmatprep.subr.mxu0 0.0
    %131 = vmatpush1.msra.mxu0 0.0
    %132 = vmatprep.subr.mxu0 0.0
    %133 = vmatpush1.msra.mxu0 0.0
    %134 = vmatprep.subr.mxu0 0.0
    %135 = vmatpush1.msra.mxu0 0.0
    %136 = vmatprep.subr.mxu0 0.0
    %137 = vmatpush1.msra.mxu0 0.0
    %138 = vmatprep.subr.mxu0 0.0
    %139 = vmatpush1.msra.mxu0 0.0
    %140 = vmatprep.subr.mxu0 0.0
    %141 = vmatpush1.msra.mxu0 0.0
    %142 = vmatprep.subr.mxu0 0.0
    %143 = vmatpush1.msra.mxu0 0.0
    %144 = vmatprep.subr.mxu0 0.0
    %145 = vmatpush1.msra.mxu0 0.0
    %146 = vmatprep.subr.mxu0 0.0
    %147 = vmatpush1.msra.mxu0 0.0
    %148 = vmatprep.subr.mxu0 0.0
    %149 = vmatpush1.msra.mxu0 %v108
    %150 = vmatprep.subr.mxu0 0.0
    %151 = vmatpush1.msra.mxu0 %v107
    %152 = vmatprep.subr.mxu0 0.0
    %153 = vmatpush2.msra.mxu0 0.0
    %154 = vmatprep.subr.mxu0 0.0
    %155 = vmatpush2.msra.mxu0 0.0
    %156 = vmatprep.subr.mxu0 0.0
    %157 = vmatpush2.msra.mxu0 0.0
    %158 = vmatprep.subr.mxu0 0.0
    %159 = vmatpush2.msra.mxu0 0.0
    %160 = vmatprep.subr.mxu0 0.0
    %161 = vmatpush2.msra.mxu0 0.0
    %162 = vmatprep.subr.mxu0 0.0
    %163 = vmatpush2.msra.mxu0 0.0
    %164 = vmatprep.subr.mxu0 0.0
    %165 = vmatpush2.msra.mxu0 0.0
    %166 = vmatprep.subr.mxu0 0.0
    %167 = vmatpush2.msra.mxu0 0.0
    %168 = vmatprep.subr.mxu0 0.0
    %169 = vmatpush2.msra.mxu0 0.0
    %170 = vmatprep.subr.mxu0 0.0
    %171 = vmatpush2.msra.mxu0 0.0
    %172 = vmatprep.subr.mxu0 0.0
    %173 = vmatpush2.msra.mxu0 0.0
    %174 = vmatprep.subr.mxu0 0.0
    %175 = vmatpush2.msra.mxu0 0.0
    %176 = vmatprep.subr.mxu0 0.0
    %177 = vmatpush2.msra.mxu0 0.0
    %178 = vmatprep.subr.mxu0 0.0
    %179 = vmatpush2.msra.mxu0 0.0
    %180 = vmatprep.subr.mxu0 0.0
    %181 = vmatpush2.msra.mxu0 0.0
    %182 = vmatprep.subr.mxu0 0.0
    %183 = vmatpush2.msra.mxu0 0.0
    %184 = vmatprep.mubr.f32.mxu0 0.0
    %185 = vmatmul.mubr.f32.gmra.mxu0 %v118
    %v186 = vpop.f32.mrf.mxu0
    %v187 = vadd.f32 %v114, %v186
    %v188 = vpop.f32.mrf.mxu0
    %189 = vdwg.mxu0
    %190 = vst.msk [vmem:[#allocation2] sm:$0xff] %vm33, %v187
    // Predicated region
    $region22: #{tpu_custom_call.1} parent=1 // pred_check
      _
    $region23: #{tpu_custom_call.1} parent=1 // pred_check_branch
      %192 = sbr.rel (0) target = $region25
    $region24: #{tpu_custom_call.1} parent=1 // pred_region
      %s194 = ssub.s32 128, 32
      %195 = vsyncadd [#allocation3], %s194
      %s196 = sshll.u32 [#allocation2], 4
      %s197 = int_to_ptr.vmem [resolvable:$true] %s196
      %202 = dma.vmem_to_hbm [thread:$0]  %s197, 32, %s5, [#allocation3], 32, 32, 2
    $region25: #{tpu_custom_call.1} parent=1 // pred_fallthru
      _
    // Predicated region
    $region26: #{tpu_custom_call.1} parent=1 // pred_check
      _
    $region27: #{tpu_custom_call.1} parent=1 // pred_check_branch
      %204 = sbr.rel (0) target = $region29
    $region28: #{tpu_custom_call.1} parent=1 // pred_region
      %205 = dma.done [#allocation3], 128
    $region29: #{tpu_custom_call.1} parent=1 // pred_fallthru
      _
    %206 = vsyncpa [#allocation3], 1

</llo_original>
